<compile_context>
chip_gen: v7x
topology: tpu7x:2x2x1
jax: 0.10.0
libtpu: 0.0.40
codegen_flags: <defaults>
</compile_context>

<pallas_src>
import functools

import jax
import jax.numpy as jnp
from jax.experimental import pallas as pl
from jax.experimental.pallas import tpu as pltpu


def _round_up(a: int, b: int) -> int:
    return (a + b - 1) // b * b


def _tpu_vmem_capacity() -> int:
    try:
        return int(pltpu.get_tpu_info().vmem_capacity_bytes)
    except Exception:
        return 64 << 20  # conservative fallback (v7x per-core VMEM)


def _conv_kernel(x_ref, w_ref, o_ref, *, th, w_out_pad, kwc, kh, stride):
    """One (batch, row-tile) grid step.

    x_ref: (rows_tot, W_out_pad, kw*C)   width-packed padded image (one batch)
    w_ref: (kh, kw*C, O_pad)             grid-invariant packed weights
    o_ref: (th*W_out_pad, O_pad)         lane-dense f32 output tile
    """
    ri = pl.program_id(1)
    row0 = pl.multiple_of(ri * (th * stride), th * stride)
    rows = th * w_out_pad

    def tap(dy):
        if stride == 1:
            xs = x_ref[pl.ds(row0 + dy, th), :, :]
        else:
            xs = x_ref[pl.ds(row0 + dy, th, stride=stride), :, :]
        # w_out_pad is sublane-aligned -> this reshape is a free view.
        return jnp.dot(xs.reshape(rows, kwc), w_ref[dy],
                       preferred_element_type=jnp.float32)

    # Accumulate straight into the f32 VMEM output block: no long-lived
    # register accumulator across the kh taps.
    o_ref[...] = tap(0)
    for dy in range(1, kh):
        o_ref[...] += tap(dy)


def conv2d_pallas(x, weights, stride=1, padding=1, compute_dtype=jnp.bfloat16):
    """x: (B, C, H, W); weights: (O, C, kh, kw) -> (B, O, H_out, W_out) f32."""
    b, c, h, w = x.shape
    o, c_w, kh, kw = weights.shape
    assert c == c_w

    h_out = (h - kh + 2 * padding) // stride + 1
    w_out = (w - kw + 2 * padding) // stride + 1
    assert h_out > 0 and w_out > 0

    dsize = jnp.dtype(compute_dtype).itemsize
    sublane = {4: 8, 2: 16, 1: 32}.get(dsize, 8)

    o_pad = _round_up(max(o, 1), 128)        # lane-dense output channels
    w_out_pad = _round_up(w_out, sublane)    # sublane-aligned -> free reshape
    kwc = kw * c                             # contraction dim per dy tap

    # ---- row tile: ~256 matmul rows per grid step (<= half the vreg file) --
    th = min(h_out, max(1, 256 // w_out_pad))

    def vmem_need(th_):
        # Conservative double-buffered estimate (lane/sublane padded).
        h_out_pad_ = _round_up(h_out, th_)
        rows_tot_ = (h_out_pad_ - 1) * stride + kh
        x_b = rows_tot_ * w_out_pad * _round_up(kwc, 128) * dsize
        w_b = kh * _round_up(kwc, sublane) * o_pad * dsize
        o_b = th_ * w_out_pad * o_pad * 4
        return 2 * (x_b + w_b + o_b)

    cap = _tpu_vmem_capacity()
    vmem_limit = max(32 << 20, min((cap * 3) // 4, 96 << 20))
    budget = vmem_limit - (4 << 20)
    while th > 1 and vmem_need(th) > budget:
        th = max(1, th // 2)
    need = vmem_need(th)
    if need + (4 << 20) > vmem_limit:
        # TODO(synk): banded row-window DMA (memory_space=pl.ANY) for images
        # whose packed rows no longer fit VMEM; until then best-effort bump.
        vmem_limit = need + (8 << 20)

    h_out_pad = _round_up(h_out, th)
    num_row_tiles = h_out_pad // th
    rows_tot = (h_out_pad - 1) * stride + kh
    cols_tot = (w_out_pad - 1) * stride + kw

    # ---- pack input: NCHW -> padded NHWC -> width space-to-depth -----------
    x_nhwc = jnp.transpose(x, (0, 2, 3, 1)).astype(compute_dtype)   # (B,H,W,C)
    pad_b = max(0, rows_tot - (h + padding))
    pad_r = max(0, cols_tot - (w + padding))
    x_pad = jnp.pad(x_nhwc, ((0, 0), (padding, pad_b), (padding, pad_r), (0, 0)))
    x_pad = x_pad[:, :rows_tot, :cols_tot, :]
    # packed[:, r, j, dx*C + cc] = padded[:, r, j*stride + dx, cc]
    x_packed = jnp.concatenate(
        [x_pad[:, :, dx:dx + (w_out_pad - 1) * stride + 1:stride, :]
         for dx in range(kw)],
        axis=-1)                                   # (B, rows_tot, W_out_pad, kw*C)

    # ---- pack weights: (O, C, kh, kw) -> (kh, kw*C, O_pad) ------------------
    w_packed = jnp.transpose(weights, (2, 3, 1, 0)).reshape(kh, kwc, o)
    w_packed = jnp.pad(w_packed, ((0, 0), (0, 0), (0, o_pad - o))
                       ).astype(compute_dtype)

    kernel = functools.partial(_conv_kernel, th=th, w_out_pad=w_out_pad,
                               kwc=kwc, kh=kh, stride=stride)

    # True (unpadded) cost for XLA's scheduler.
    flops = 2 * b * h_out * w_out * (c * kh * kw) * o
    bytes_accessed = (x_packed.size * dsize + w_packed.size * dsize
                      + b * h_out * w_out * o * 4)

    out = pl.pallas_call(
        kernel,
        out_shape=jax.ShapeDtypeStruct((b, h_out_pad * w_out_pad, o_pad),
                                       jnp.float32),
        grid_spec=pltpu.PrefetchScalarGridSpec(
            num_scalar_prefetch=0,
            grid=(b, num_row_tiles),
            in_specs=[
                # Packed image of one batch element; block index constant
                # across the inner row-tile axis -> fetched once per batch.
                pl.BlockSpec((None, rows_tot, w_out_pad, kwc),
                             lambda bi, ri: (bi, 0, 0, 0)),
                # Grid-invariant packed weights.
                pl.BlockSpec((kh, kwc, o_pad),
                             lambda bi, ri: (0, 0, 0)),
            ],
            out_specs=pl.BlockSpec((None, th * w_out_pad, o_pad),
                                   lambda bi, ri: (bi, ri, 0)),
        ),
        compiler_params=pltpu.CompilerParams(
            dimension_semantics=("parallel", "parallel"),
            vmem_limit_bytes=int(vmem_limit),
        ),
        cost_estimate=pl.CostEstimate(flops=int(flops), transcendentals=0,
                                      bytes_accessed=int(bytes_accessed)),
    )(x_packed, w_packed)

    # (B, M_pad, O_pad) -> (B, H_out, W_out, O) -> NCHW (module semantics).
    y = out.reshape(b, h_out_pad, w_out_pad, o_pad)[:, :h_out, :w_out, :o]
    return jnp.transpose(y, (0, 3, 1, 2))


def conv2d_reference(x, weights, stride=1, padding=1):
    """Pure-JAX reference for correctness check."""
    dn = jax.lax.conv_dimension_numbers(x.shape, weights.shape,
                                        ("NCHW", "OIHW", "NCHW"))
    return jax.lax.conv_general_dilated(
        x, weights,
        window_strides=(stride, stride),
        padding=((padding, padding), (padding, padding)),
        dimension_numbers=dn,
    )


if __name__ == "__main__":
    key = jax.random.PRNGKey(0)
    kx, kw_key = jax.random.split(key)

    B, C_IN, C_OUT, H, W = 2, 4, 8, 16, 16
    x = jax.random.normal(kx, (B, C_IN, H, W), dtype=jnp.float32)
    weights = jax.random.normal(kw_key, (C_OUT, C_IN, 3, 3), dtype=jnp.float32)

    y = conv2d_pallas(x, weights, stride=1, padding=1)
    y = jax.block_until_ready(y)

    # Kernel computes exact bf16 products with f32 accumulation; compare
    # against the reference on bf16-rounded operands (only f32 summation
    # order differs).
    x_bf = x.astype(jnp.bfloat16).astype(jnp.float32)
    w_bf = weights.astype(jnp.bfloat16).astype(jnp.float32)
    y_ref = conv2d_reference(x_bf, w_bf, stride=1, padding=1)

    assert y.shape == (B, C_OUT, H, W), "Output shape mismatch"
    assert jnp.allclose(y, y_ref, atol=1e-3, rtol=1e-3), \
        "Numerical mismatch vs reference"

    print("KERNEL_OK")
</pallas_src>

<mosaic_0001>
module attributes {stable_mosaic.version = 11 : i64} {
  func.func @_conv_kernel(%arg0: i32, %arg1: i32, %arg2: memref<1x18x16x12xbf16, #tpu.memory_space<vmem>>, %arg3: memref<3x12x128xbf16, #tpu.memory_space<vmem>>, %arg4: memref<1x256x128xf32, #tpu.memory_space<vmem>>) attributes {dimension_semantics = [#tpu.dimension_semantics<parallel>, #tpu.dimension_semantics<parallel>], iteration_bounds = array<i64: 2, 1>, scalar_prefetch = 0 : i64, scratch_operands = 0 : i64, tpu.core_type = #tpu.core_type<tc>, window_params = [{transform_indices = @transform_0, window_bounds = array<i64: 1, 18, 16, 12>}, {pipeline_mode = #tpu.pipeline_mode<synchronous>, transform_indices = @transform_1, window_bounds = array<i64: 3, 12, 128>}, {transform_indices = @transform_2, window_bounds = array<i64: 1, 256, 128>}]} {
    %c16_i32 = arith.constant 16 : i32
    %0 = arith.muli %arg1, %c16_i32 : i32
    %1 = tpu.assume_multiple %0, 16 : i32
    %c0_i32 = arith.constant 0 : i32
    %2 = arith.addi %1, %c0_i32 : i32
    %c0 = arith.constant 0 : index
    %3 = arith.index_cast %2 : i32 to index
    %c0_0 = arith.constant 0 : index
    %c0_1 = arith.constant 0 : index
    %4 = vector.load %arg2[%c0, %3, %c0_0, %c0_1] : memref<1x18x16x12xbf16, #tpu.memory_space<vmem>>, vector<1x16x16x12xbf16>
    %5 = vector.shape_cast %4 : vector<1x16x16x12xbf16> to vector<16x16x12xbf16>
    %6 = vector.shape_cast %5 : vector<16x16x12xbf16> to vector<256x12xbf16>
    %c0_2 = arith.constant 0 : index
    %c0_3 = arith.constant 0 : index
    %c0_4 = arith.constant 0 : index
    %7 = vector.load %arg3[%c0_2, %c0_3, %c0_4] : memref<3x12x128xbf16, #tpu.memory_space<vmem>>, vector<1x12x128xbf16>
    %8 = vector.shape_cast %7 : vector<1x12x128xbf16> to vector<12x128xbf16>
    %cst = arith.constant dense<0.000000e+00> : vector<256x128xf32>
    %9 = tpu.matmul %6, %8, %cst {dimension_numbers = #tpu.dot_dimension_numbers<[1], [0], [0], [1], [0, 0, 1, 1], [], []>} : vector<256x12xbf16>, vector<12x128xbf16>, vector<256x128xf32> -> vector<256x128xf32>
    %c0_5 = arith.constant 0 : index
    %c0_6 = arith.constant 0 : index
    %c0_7 = arith.constant 0 : index
    %10 = vector.load %arg4[%c0_5, %c0_6, %c0_7] : memref<1x256x128xf32, #tpu.memory_space<vmem>>, vector<1x256x128xf32>
    %11 = vector.shape_cast %10 : vector<1x256x128xf32> to vector<256x128xf32>
    %12 = vector.shape_cast %9 : vector<256x128xf32> to vector<1x256x128xf32>
    tpu.vector_store %arg4[%c0_5, %c0_6, %c0_7], %12 {strides = array<i32>} : memref<1x256x128xf32, #tpu.memory_space<vmem>>, vector<1x256x128xf32>,
    %c0_8 = arith.constant 0 : index
    %c0_9 = arith.constant 0 : index
    %c0_10 = arith.constant 0 : index
    %13 = vector.load %arg4[%c0_8, %c0_9, %c0_10] : memref<1x256x128xf32, #tpu.memory_space<vmem>>, vector<1x256x128xf32>
    %14 = vector.shape_cast %13 : vector<1x256x128xf32> to vector<256x128xf32>
    %c1_i32 = arith.constant 1 : i32
    %15 = arith.addi %1, %c1_i32 : i32
    %c0_11 = arith.constant 0 : index
    %16 = arith.index_cast %15 : i32 to index
    %c0_12 = arith.constant 0 : index
    %c0_13 = arith.constant 0 : index
    %17 = vector.load %arg2[%c0_11, %16, %c0_12, %c0_13] : memref<1x18x16x12xbf16, #tpu.memory_space<vmem>>, vector<1x16x16x12xbf16>
    %18 = vector.shape_cast %17 : vector<1x16x16x12xbf16> to vector<16x16x12xbf16>
    %19 = vector.shape_cast %18 : vector<16x16x12xbf16> to vector<256x12xbf16>
    %c1 = arith.constant 1 : index
    %c0_14 = arith.constant 0 : index
    %c0_15 = arith.constant 0 : index
    %20 = vector.load %arg3[%c1, %c0_14, %c0_15] : memref<3x12x128xbf16, #tpu.memory_space<vmem>>, vector<1x12x128xbf16>
    %21 = vector.shape_cast %20 : vector<1x12x128xbf16> to vector<12x128xbf16>
    %cst_16 = arith.constant dense<0.000000e+00> : vector<256x128xf32>
    %22 = tpu.matmul %19, %21, %cst_16 {dimension_numbers = #tpu.dot_dimension_numbers<[1], [0], [0], [1], [0, 0, 1, 1], [], []>} : vector<256x12xbf16>, vector<12x128xbf16>, vector<256x128xf32> -> vector<256x128xf32>
    %23 = arith.addf %14, %22 : vector<256x128xf32>
    %c0_17 = arith.constant 0 : index
    %c0_18 = arith.constant 0 : index
    %c0_19 = arith.constant 0 : index
    %24 = vector.load %arg4[%c0_17, %c0_18, %c0_19] : memref<1x256x128xf32, #tpu.memory_space<vmem>>, vector<1x256x128xf32>
    %25 = vector.shape_cast %24 : vector<1x256x128xf32> to vector<256x128xf32>
    %26 = vector.shape_cast %23 : vector<256x128xf32> to vector<1x256x128xf32>
    tpu.vector_store %arg4[%c0_17, %c0_18, %c0_19], %26 {strides = array<i32>} : memref<1x256x128xf32, #tpu.memory_space<vmem>>, vector<1x256x128xf32>,
    %c0_20 = arith.constant 0 : index
    %c0_21 = arith.constant 0 : index
    %c0_22 = arith.constant 0 : index
    %27 = vector.load %arg4[%c0_20, %c0_21, %c0_22] : memref<1x256x128xf32, #tpu.memory_space<vmem>>, vector<1x256x128xf32>
    %28 = vector.shape_cast %27 : vector<1x256x128xf32> to vector<256x128xf32>
    %c2_i32 = arith.constant 2 : i32
    %29 = arith.addi %1, %c2_i32 : i32
    %c0_23 = arith.constant 0 : index
    %30 = arith.index_cast %29 : i32 to index
    %c0_24 = arith.constant 0 : index
    %c0_25 = arith.constant 0 : index
    %31 = vector.load %arg2[%c0_23, %30, %c0_24, %c0_25] : memref<1x18x16x12xbf16, #tpu.memory_space<vmem>>, vector<1x16x16x12xbf16>
    %32 = vector.shape_cast %31 : vector<1x16x16x12xbf16> to vector<16x16x12xbf16>
    %33 = vector.shape_cast %32 : vector<16x16x12xbf16> to vector<256x12xbf16>
    %c2 = arith.constant 2 : index
    %c0_26 = arith.constant 0 : index
    %c0_27 = arith.constant 0 : index
    %34 = vector.load %arg3[%c2, %c0_26, %c0_27] : memref<3x12x128xbf16, #tpu.memory_space<vmem>>, vector<1x12x128xbf16>
    %35 = vector.shape_cast %34 : vector<1x12x128xbf16> to vector<12x128xbf16>
    %cst_28 = arith.constant dense<0.000000e+00> : vector<256x128xf32>
    %36 = tpu.matmul %33, %35, %cst_28 {dimension_numbers = #tpu.dot_dimension_numbers<[1], [0], [0], [1], [0, 0, 1, 1], [], []>} : vector<256x12xbf16>, vector<12x128xbf16>, vector<256x128xf32> -> vector<256x128xf32>
    %37 = arith.addf %28, %36 : vector<256x128xf32>
    %c0_29 = arith.constant 0 : index
    %c0_30 = arith.constant 0 : index
    %c0_31 = arith.constant 0 : index
    %38 = vector.load %arg4[%c0_29, %c0_30, %c0_31] : memref<1x256x128xf32, #tpu.memory_space<vmem>>, vector<1x256x128xf32>
    %39 = vector.shape_cast %38 : vector<1x256x128xf32> to vector<256x128xf32>
    %40 = vector.shape_cast %37 : vector<256x128xf32> to vector<1x256x128xf32>
    tpu.vector_store %arg4[%c0_29, %c0_30, %c0_31], %40 {strides = array<i32>} : memref<1x256x128xf32, #tpu.memory_space<vmem>>, vector<1x256x128xf32>,
    return
  }
  func.func @transform_0(%arg0: i32, %arg1: i32) -> (i32, i32, i32, i32) {
    %c0_i32 = arith.constant 0 : i32
    %c0_i32_0 = arith.constant 0 : i32
    %c0_i32_1 = arith.constant 0 : i32
    %c0_i32_2 = arith.constant 0 : i32
    return %arg0, %c0_i32, %c0_i32_0, %c0_i32_1 : i32, i32, i32, i32
  }
  func.func @transform_1(%arg0: i32, %arg1: i32) -> (i32, i32, i32) {
    %c0_i32 = arith.constant 0 : i32
    %c0_i32_0 = arith.constant 0 : i32
    %c0_i32_1 = arith.constant 0 : i32
    %c0_i32_2 = arith.constant 0 : i32
    return %c0_i32, %c0_i32_0, %c0_i32_1 : i32, i32, i32
  }
  func.func @transform_2(%arg0: i32, %arg1: i32) -> (i32, i32, i32) {
    %c0_i32 = arith.constant 0 : i32
    %c0_i32_0 = arith.constant 0 : i32
    return %arg0, %arg1, %c0_i32 : i32, i32, i32
  }
}

</mosaic_0001>

<llo_original>
// kernel: tpu_custom_call.1
$region0: #{tpu_custom_call.1}
  #allocation0 [shape = 'u32[]', space=smem, size = 0x4, offset = 0x4, fixed_abs, tag = 'smem constant byte address 0x4 - core index']
  #allocation1 [shape = 'u32[144,128]{1,0:T(1,128)}', space=vmem, size = 0x12000, scoped, tag = 'internal scratch']
  %s0 = inlined_call_operand.vmem [shape: bf16[2,18,16,12], index: 0, kind: input, shape index: {}]
  %s1 = inlined_call_operand.vmem [shape: bf16[3,12,128], index: 1, kind: input, shape index: {}]
  %s2 = inlined_call_operand.hbm [shape: f32[2,256,128], index: 2, kind: output, shape index: {}]
  %s3 = sld [smem:[#allocation0]]
  $region41: #{tpu_custom_call.1} parent=0
    _
  %s5 = ssub.s32 1, %s3
  %s6 = scalar_select 0, %s5, %s3
  $region1: #{tpu_custom_call.1} parent=0
    #allocation2 [shape = 'u8[262144]{0}', space=vmem, size = 0x40000, scoped, tag = 'output window, operand 0']
    #allocation3 [shape = 's32[2]{0}', space=sflag, size = 0x8, scoped, tag = 'scoped memory for tpu_custom_call.1']
    %7 = vsyncpa [#allocation3], 0
    %s8 = scalar_lea.sflag [#allocation3], 1
    %9 = vsyncpa %s8, 0
    loop: start=0, step=1, limit=4
    $region2: #{tpu_custom_call.1} parent=1 // loop_pre_header
      _
    $region3: #{tpu_custom_call.1} parent=1 // loop_header
      %s11 = sphi 0, %s15
      %p12 = scmp.ge.s32.totalorder %s11, 4
      %s18 = sphi 0, %s30
      %s19 = sphi 0, %s26
      %s20 = sphi 0, %s18
      %s21 = sphi 0, %s19
      %s22 = sphi 0, %s20
      %s23 = sphi 0, %s21
      %s33 = sphi 0, %s35
      %s36 = sphi 0, %s33
      %s37 = sphi 0, %s36
      %s53 = sphi 0, %s37
      %s57 = sphi 0, %s57
      %s59 = sphi 0, %s57
      %s60 = sphi 0, %s59
      %s74 = sphi 0, %s60
      %s82 = sphi 0, %s84
      %s85 = sphi 0, %s82
      %s86 = sphi 0, %s85
      %s102 = sphi 0, %s86
    $region4: #{tpu_custom_call.1} parent=1 // loop_header_branch
      %14 = sbr.rel (%p12) target = $region8
    $region5: #{tpu_custom_call.1} parent=1 // loop_body
      %s16 = ssub.s32 %s11, 1
      %s17 = ssub.s32 %s11, 2
      %s24 = sadd.s32 1, %s19
      %p25 = scmp.ge.s32.totalorder %s24, 1
      %s26 = scalar_select %p25, 0, %s24
      %s27 = sadd.s32 1, %s18
      %s28 = scalar_select %p25, %s27, %s18
      %p29 = scmp.ge.s32.totalorder %s28, 2
      %s30 = scalar_select %p29, 0, %s28
      %s31 = ssub.s32 %s18, %s30
      %p32 = scmp.eq.s32.totalorder %s31, 0
      %s34 = sadd.s32 %s33, 1
      %s35 = scalar_select %p32, %s33, %s34
      %p38 = pneg %p32
      %p39 = scmp.eq.s32.totalorder %s11, 1
      %p40 = por %p38, %p39
      %p41 = scmp.ne.s32.totalorder %s33, %s36
      %p42 = scmp.eq.s32.totalorder %s11, 0
      %p43 = por %p41, %p42
      %p44 = scmp.ne.s32.totalorder %s33, %s36
      %p45 = scmp.eq.s32.totalorder %s16, 1
      %p46 = por %p44, %p45
      %p47 = scmp.ne.s32.totalorder %s36, %s37
      %p48 = scmp.eq.s32.totalorder %s16, 0
      %p49 = por %p47, %p48
      %p50 = scmp.ne.s32.totalorder %s36, %s37
      %p51 = scmp.eq.s32.totalorder %s17, 1
      %p52 = por %p50, %p51
      %p54 = scmp.ne.s32.totalorder %s37, %s53
      %p55 = scmp.eq.s32.totalorder %s17, 0
      %p56 = por %p54, %p55
      %s58 = sadd.s32 %s57, 1
      %p61 = scmp.eq.s32.totalorder %s11, 1
      %p62 = scmp.ne.s32.totalorder %s57, %s59
      %p63 = scmp.eq.s32.totalorder %s11, 0
      %p64 = por %p62, %p63
      %p65 = scmp.ne.s32.totalorder %s57, %s59
      %p66 = scmp.eq.s32.totalorder %s16, 1
      %p67 = por %p65, %p66
      %p68 = scmp.ne.s32.totalorder %s59, %s60
      %p69 = scmp.eq.s32.totalorder %s16, 0
      %p70 = por %p68, %p69
      %p71 = scmp.ne.s32.totalorder %s59, %s60
      %p72 = scmp.eq.s32.totalorder %s17, 1
      %p73 = por %p71, %p72
      %p75 = scmp.ne.s32.totalorder %s60, %s74
      %p76 = scmp.eq.s32.totalorder %s17, 0
      %p77 = por %p75, %p76
      %s78 = ssub.s32 %s18, %s30
      %s79 = ssub.s32 %s19, %s26
      %s80 = sor.u32 %s78, %s79
      %p81 = scmp.eq.s32.totalorder %s80, 0
      %s83 = sadd.s32 %s82, 1
      %s84 = scalar_select %p81, %s82, %s83
      %p87 = pneg %p81
      %p88 = scmp.eq.s32.totalorder %s11, 1
      %p89 = por %p87, %p88
      %p90 = scmp.ne.s32.totalorder %s82, %s85
      %p91 = scmp.eq.s32.totalorder %s11, 0
      %p92 = por %p90, %p91
      %p93 = scmp.ne.s32.totalorder %s82, %s85
      %p94 = scmp.eq.s32.totalorder %s16, 1
      %p95 = por %p93, %p94
      %p96 = scmp.ne.s32.totalorder %s85, %s86
      %p97 = scmp.eq.s32.totalorder %s16, 0
      %p98 = por %p96, %p97
      %p99 = scmp.ne.s32.totalorder %s85, %s86
      %p100 = scmp.eq.s32.totalorder %s17, 1
      %p101 = por %p99, %p100
      %p103 = scmp.ne.s32.totalorder %s86, %s102
      %p104 = scmp.eq.s32.totalorder %s17, 0
      %p105 = por %p103, %p104
      %p106 = scmp.le.s32.totalorder 1, %s11
      %p107 = scmp.lt.s32.totalorder %s11, 3
      %p108 = pnand %p106, %p107
      %p109 = pneg %p108
      // Predicated region
      $region9: #{tpu_custom_call.1} parent=5 // pred_check
        _
      $region10: #{tpu_custom_call.1} parent=5 // pred_check_branch
        %111 = sbr.rel (%p108) target = $region12
      $region11: #{tpu_custom_call.1} parent=5 // pred_region
        %s112 = ssub.s32 %s11, 1
        // Predicated region
        $region13: #{tpu_custom_call.1} parent=11 // pred_check
          %p113 = pneg %p70
        $region14: #{tpu_custom_call.1} parent=11 // pred_check_branch
          %115 = sbr.rel (%p113) target = $region16
        $region15: #{tpu_custom_call.1} parent=11 // pred_region
          _
        $region16: #{tpu_custom_call.1} parent=11 // pred_fallthru
          _
      $region12: #{tpu_custom_call.1} parent=5 // pred_fallthru
        _
      %p116 = scmp.lt.s32.totalorder %s11, 2
      // Predicated region
      $region17: #{tpu_custom_call.1} parent=5 // pred_check
        %p117 = pneg %p116
      $region18: #{tpu_custom_call.1} parent=5 // pred_check_branch
        %119 = sbr.rel (%p117) target = $region20
      $region19: #{tpu_custom_call.1} parent=5 // pred_region
        // Predicated region
        $region21: #{tpu_custom_call.1} parent=19 // pred_check
          %p120 = pneg %p43
        $region22: #{tpu_custom_call.1} parent=19 // pred_check_branch
          %122 = sbr.rel (%p120) target = $region24
        $region23: #{tpu_custom_call.1} parent=19 // pred_region
          %p123 = scmp.lt.s32.totalorder %s18, 1
          %s124 = scalar_select %p123, %s18, 1
          %s125 = smul.addr %s124, 36
          %s126 = smul.addr %s125, 4
          %s127 = scalar_lea.vmem %s0, %s126
        $region24: #{tpu_custom_call.1} parent=19 // pred_fallthru
          _
      $region20: #{tpu_custom_call.1} parent=5 // pred_fallthru
        _
      %p128 = scmp.le.s32.totalorder 1, %s11
      %p129 = scmp.lt.s32.totalorder %s11, 3
      %p130 = pnand %p128, %p129
      %p131 = pneg %p130
      // Predicated region
      $region25: #{tpu_custom_call.1} parent=5 // pred_check
        _
      $region26: #{tpu_custom_call.1} parent=5 // pred_check_branch
        %133 = sbr.rel (%p130) target = $region28
      $region27: #{tpu_custom_call.1} parent=5 // pred_region
        %s134 = ssub.s32 %s11, 1
        %p135 = scmp.lt.s32.totalorder %s20, 1
        %s136 = scalar_select %p135, %s20, 1
        %s137 = smul.addr %s136, 36
        %s138 = smul.addr %s137, 4
        %s139 = scalar_lea.vmem %s0, %s138
        %p140 = pneg %p49
        %p141 = pneg %p46
        %p142 = pneg %p70
        %p143 = pneg %p67
        %p144 = pneg %p98
        %p145 = pneg %p95
        %s146 = sand.u32 %s85, 1
        %s147 = scalar_lea.sflag [#allocation3], %s146
        %s148 = sand.u32 %s85, 1
        %s149 = smul.addr %s148, 256
        %s150 = scalar_lea.vmem [#allocation2], %s149
        %p151 = scmp.lt.s32.totalorder %s20, 1
        %s152 = scalar_select %p151, %s20, 1
        %s153 = smul.addr %s152, 36
        %s154 = smul.addr %s153, 4
        %s155 = scalar_lea.vmem %s0, %s154
        %s156 = smul.u32 32, %s21
        %s158 = smul.u32 %s21, 16
        %s159 = smul.u32 %s158, 2
        %s160 = smul.addr %s159, 4
        %s161 = scalar_lea.vmem %s155, %s160
        %v162 = vld [vmem:[%s161] sm:$0xf]
        %v163 = vld [vmem:[%s161 + $0x4] sm:$0xf]
        %v164 = vld [vmem:[%s161 + $0x8] sm:$0xf]
        %v165 = vld [vmem:[%s161 + $0xc] sm:$0xf]
        %v166 = vld [vmem:[%s161 + $0x10] sm:$0xf]
        %v167 = vld [vmem:[%s161 + $0x14] sm:$0xf]
        %v168 = vld [vmem:[%s161 + $0x18] sm:$0xf]
        %v169 = vld [vmem:[%s161 + $0x1c] sm:$0xf]
        %v170 = vld [vmem:[%s161 + $0x20] sm:$0xf]
        %v171 = vld [vmem:[%s161 + $0x24] sm:$0xf]
        %v172 = vld [vmem:[%s161 + $0x28] sm:$0xf]
        %v173 = vld [vmem:[%s161 + $0x2c] sm:$0xf]
        %v174 = vld [vmem:[%s161 + $0x30] sm:$0xf]
        %v175 = vld [vmem:[%s161 + $0x34] sm:$0xf]
        %v176 = vld [vmem:[%s161 + $0x38] sm:$0xf]
        %v177 = vld [vmem:[%s161 + $0x3c] sm:$0xf]
        %v178 = vld [vmem:[%s161 + $0x40] sm:$0xf]
        %v179 = vld [vmem:[%s161 + $0x44] sm:$0xf]
        %v180 = vld [vmem:[%s161 + $0x48] sm:$0xf]
        %v181 = vld [vmem:[%s161 + $0x4c] sm:$0xf]
        %v182 = vld [vmem:[%s161 + $0x50] sm:$0xf]
        %v183 = vld [vmem:[%s161 + $0x54] sm:$0xf]
        %v184 = vld [vmem:[%s161 + $0x58] sm:$0xf]
        %v185 = vld [vmem:[%s161 + $0x5c] sm:$0xf]
        %v186 = vld [vmem:[%s161 + $0x60] sm:$0xf]
        %v187 = vld [vmem:[%s161 + $0x64] sm:$0xf]
        %v188 = vld [vmem:[%s161 + $0x68] sm:$0xf]
        %v189 = vld [vmem:[%s161 + $0x6c] sm:$0xf]
        %v190 = vld [vmem:[%s161 + $0x70] sm:$0xf]
        %v191 = vld [vmem:[%s161 + $0x74] sm:$0xf]
        %v192 = vld [vmem:[%s161 + $0x78] sm:$0xf]
        %v193 = vld [vmem:[%s161 + $0x7c] sm:$0xf]
        %v194 = vld [vmem:[%s1] sm:$0xf]
        %v195 = vld [vmem:[%s1 + $0x4] sm:$0x3]
        %v228 = vunpack.c.l.b16 %v162
        %v229 = vunpack.c.l.b16 %v163
        %v230 = vunpack.c.l.b16 %v164
        %v231 = vunpack.c.l.b16 %v165
        %v232 = vunpack.c.l.b16 %v166
        %v233 = vunpack.c.l.b16 %v167
        %v234 = vunpack.c.l.b16 %v168
        %v235 = vunpack.c.l.b16 %v169
        %v236 = vunpack.c.l.b16 %v170
        %v237 = vunpack.c.l.b16 %v171
        %v238 = vunpack.c.l.b16 %v172
        %v239 = vunpack.c.l.b16 %v173
        %v240 = vunpack.c.l.b16 %v174
        %v241 = vunpack.c.l.b16 %v175
        %v242 = vunpack.c.l.b16 %v176
        %v243 = vunpack.c.l.b16 %v177
        %v244 = vunpack.c.l.b16 %v178
        %v245 = vunpack.c.l.b16 %v179
        %v246 = vunpack.c.l.b16 %v180
        %v247 = vunpack.c.l.b16 %v181
        %v248 = vunpack.c.l.b16 %v182
        %v249 = vunpack.c.l.b16 %v183
        %v250 = vunpack.c.l.b16 %v184
        %v251 = vunpack.c.l.b16 %v185
        %v252 = vunpack.c.l.b16 %v186
        %v253 = vunpack.c.l.b16 %v187
        %v254 = vunpack.c.l.b16 %v188
        %v255 = vunpack.c.l.b16 %v189
        %v256 = vunpack.c.l.b16 %v190
        %v257 = vunpack.c.l.b16 %v191
        %v258 = vunpack.c.l.b16 %v192
        %v259 = vunpack.c.l.b16 %v193
        %v260 = vpack.c.b16 %v229, %v228
        %v261 = vpack.c.b16 %v231, %v230
        %v262 = vpack.c.b16 %v233, %v232
        %v263 = vpack.c.b16 %v235, %v234
        %v264 = vpack.c.b16 %v237, %v236
        %v265 = vpack.c.b16 %v239, %v238
        %v266 = vpack.c.b16 %v241, %v240
        %v267 = vpack.c.b16 %v243, %v242
        %v268 = vpack.c.b16 %v245, %v244
        %v269 = vpack.c.b16 %v247, %v246
        %v270 = vpack.c.b16 %v249, %v248
        %v271 = vpack.c.b16 %v251, %v250
        %v272 = vpack.c.b16 %v253, %v252
        %v273 = vpack.c.b16 %v255, %v254
        %v274 = vpack.c.b16 %v257, %v256
        %v275 = vpack.c.b16 %v259, %v258
        %v278 = vunpack.c.l.b16 %v194
        %v279 = vunpack.c.l.b16 %v195
        %v280 = vpack.c.b16 %v279, %v278
        %vm281 = vcmask 97280
        %v283 = vsel %vm281, %v260, 0
        %v286 = vsel %vm281, %v261, 0
        %v289 = vsel %vm281, %v262, 0
        %v292 = vsel %vm281, %v263, 0
        %v295 = vsel %vm281, %v264, 0
        %v298 = vsel %vm281, %v265, 0
        %v301 = vsel %vm281, %v266, 0
        %v304 = vsel %vm281, %v267, 0
        %v307 = vsel %vm281, %v268, 0
        %v310 = vsel %vm281, %v269, 0
        %v313 = vsel %vm281, %v270, 0
        %v316 = vsel %vm281, %v271, 0
        %v319 = vsel %vm281, %v272, 0
        %v322 = vsel %vm281, %v273, 0
        %v325 = vsel %vm281, %v274, 0
        %v328 = vsel %vm281, %v275, 0
        %vm330 = vcmask 1045504
        %v332 = vsel %vm330, %v280, 0
        %334 = vmatprep.subr.bf16.mxu0 0
        %335 = vmatpush1.bf16.msra.mxu0 %v332
        %336 = vmatprep.subr.bf16.mxu0 0
        %337 = vmatpush1.bf16.msra.mxu0 0
        %338 = vmatprep.subr.bf16.mxu0 0
        %339 = vmatpush1.bf16.msra.mxu0 0
        %340 = vmatprep.subr.bf16.mxu0 0
        %341 = vmatpush1.bf16.msra.mxu0 0
        %342 = vmatprep.subr.bf16.mxu0 0
        %343 = vmatpush1.bf16.msra.mxu0 0
        %344 = vmatprep.subr.bf16.mxu0 0
        %345 = vmatpush1.bf16.msra.mxu0 0
        %346 = vmatprep.subr.bf16.mxu0 0
        %347 = vmatpush1.bf16.msra.mxu0 0
        %348 = vmatprep.subr.bf16.mxu0 0
        %349 = vmatpush1.bf16.msra.mxu0 0
        %350 = vmatprep.subr.bf16.mxu0 0
        %351 = vmatpush1.bf16.msra.mxu0 0
        %352 = vmatprep.subr.bf16.mxu0 0
        %353 = vmatpush1.bf16.msra.mxu0 0
        %354 = vmatprep.subr.bf16.mxu0 0
        %355 = vmatpush1.bf16.msra.mxu0 0
        %356 = vmatprep.subr.bf16.mxu0 0
        %357 = vmatpush1.bf16.msra.mxu0 0
        %358 = vmatprep.subr.bf16.mxu0 0
        %359 = vmatpush1.bf16.msra.mxu0 0
        %360 = vmatprep.subr.bf16.mxu0 0
        %361 = vmatpush1.bf16.msra.mxu0 0
        %362 = vmatprep.subr.bf16.mxu0 0
        %363 = vmatpush1.bf16.msra.mxu0 0
        %364 = vmatprep.subr.bf16.mxu0 0
        %365 = vmatpush1.bf16.msra.mxu0 0
        %366 = vmatprep.mubr.bf16.mxu0 0
        %367 = vmatmul.mubr.bf16.gmra.mrb[0].mxu0 %v283
        %v368 = vpop.f32.mrb[0].mxu0
        %v369 = vadd.f32 0.0, %v368
        %v370 = vpop.f32.mrb[0].mxu0
        %v371 = vpop.f32.mrb[0].mxu0
        %v372 = vadd.f32 0.0, %v371
        %v373 = vpop.f32.mrb[0].mxu0
        %374 = vmatprep.mubr.bf16.mxu0 0
        %375 = vmatmul.mubr.bf16.gmra.mrb[0].mxu0 %v286
        %v376 = vpop.f32.mrb[0].mxu0
        %v377 = vadd.f32 0.0, %v376
        %v378 = vpop.f32.mrb[0].mxu0
        %v379 = vpop.f32.mrb[0].mxu0
        %v380 = vadd.f32 0.0, %v379
        %v381 = vpop.f32.mrb[0].mxu0
        %382 = vmatprep.mubr.bf16.mxu0 0
        %383 = vmatmul.mubr.bf16.gmra.mrb[0].mxu0 %v289
        %v384 = vpop.f32.mrb[0].mxu0
        %v385 = vadd.f32 0.0, %v384
        %v386 = vpop.f32.mrb[0].mxu0
        %v387 = vpop.f32.mrb[0].mxu0
        %v388 = vadd.f32 0.0, %v387
        %v389 = vpop.f32.mrb[0].mxu0
        %390 = vmatprep.mubr.bf16.mxu0 0
        %391 = vmatmul.mubr.bf16.gmra.mrb[0].mxu0 %v292
        %v392 = vpop.f32.mrb[0].mxu0
        %v393 = vadd.f32 0.0, %v392
        %v394 = vpop.f32.mrb[0].mxu0
        %v395 = vpop.f32.mrb[0].mxu0
        %v396 = vadd.f32 0.0, %v395
        %v397 = vpop.f32.mrb[0].mxu0
        %398 = vmatprep.mubr.bf16.mxu0 0
        %399 = vmatmul.mubr.bf16.gmra.mrb[0].mxu0 %v295
        %v400 = vpop.f32.mrb[0].mxu0
        %v401 = vadd.f32 0.0, %v400
        %v402 = vpop.f32.mrb[0].mxu0
        %v403 = vpop.f32.mrb[0].mxu0
        %v404 = vadd.f32 0.0, %v403
        %v405 = vpop.f32.mrb[0].mxu0
        %406 = vmatprep.mubr.bf16.mxu0 0
        %407 = vmatmul.mubr.bf16.gmra.mrb[0].mxu0 %v298
        %v408 = vpop.f32.mrb[0].mxu0
        %v409 = vadd.f32 0.0, %v408
        %v410 = vpop.f32.mrb[0].mxu0
        %v411 = vpop.f32.mrb[0].mxu0
        %v412 = vadd.f32 0.0, %v411
        %v413 = vpop.f32.mrb[0].mxu0
        %414 = vmatprep.mubr.bf16.mxu0 0
        %415 = vmatmul.mubr.bf16.gmra.mrb[0].mxu0 %v301
        %v416 = vpop.f32.mrb[0].mxu0
        %v417 = vadd.f32 0.0, %v416
        %v418 = vpop.f32.mrb[0].mxu0
        %v419 = vpop.f32.mrb[0].mxu0
        %v420 = vadd.f32 0.0, %v419
        %v421 = vpop.f32.mrb[0].mxu0
        %422 = vmatprep.mubr.bf16.mxu0 0
        %423 = vmatmul.mubr.bf16.gmra.mrb[0].mxu0 %v304
        %v424 = vpop.f32.mrb[0].mxu0
        %v425 = vadd.f32 0.0, %v424
        %v426 = vpop.f32.mrb[0].mxu0
        %v427 = vpop.f32.mrb[0].mxu0
        %v428 = vadd.f32 0.0, %v427
        %v429 = vpop.f32.mrb[0].mxu0
        %430 = vmatprep.mubr.bf16.mxu0 0
        %431 = vmatmul.mubr.bf16.gmra.mrb[0].mxu0 %v307
        %v432 = vpop.f32.mrb[0].mxu0
        %v433 = vadd.f32 0.0, %v432
        %v434 = vpop.f32.mrb[0].mxu0
        %v435 = vpop.f32.mrb[0].mxu0
        %v436 = vadd.f32 0.0, %v435
        %v437 = vpop.f32.mrb[0].mxu0
        %438 = vmatprep.mubr.bf16.mxu0 0
        %439 = vmatmul.mubr.bf16.gmra.mrb[0].mxu0 %v310
        %v440 = vpop.f32.mrb[0].mxu0
        %v441 = vadd.f32 0.0, %v440
        %v442 = vpop.f32.mrb[0].mxu0
        %v443 = vpop.f32.mrb[0].mxu0
        %v444 = vadd.f32 0.0, %v443
        %v445 = vpop.f32.mrb[0].mxu0
        %446 = vmatprep.mubr.bf16.mxu0 0
        %447 = vmatmul.mubr.bf16.gmra.mrb[0].mxu0 %v313
        %v448 = vpop.f32.mrb[0].mxu0
        %v449 = vadd.f32 0.0, %v448
        %v450 = vpop.f32.mrb[0].mxu0
        %v451 = vpop.f32.mrb[0].mxu0
        %v452 = vadd.f32 0.0, %v451
        %v453 = vpop.f32.mrb[0].mxu0
        %454 = vmatprep.mubr.bf16.mxu0 0
        %455 = vmatmul.mubr.bf16.gmra.mrb[0].mxu0 %v316
        %v456 = vpop.f32.mrb[0].mxu0
        %v457 = vadd.f32 0.0, %v456
        %v458 = vpop.f32.mrb[0].mxu0
        %v459 = vpop.f32.mrb[0].mxu0
        %v460 = vadd.f32 0.0, %v459
        %v461 = vpop.f32.mrb[0].mxu0
        %462 = vmatprep.mubr.bf16.mxu0 0
        %463 = vmatmul.mubr.bf16.gmra.mrb[0].mxu0 %v319
        %v464 = vpop.f32.mrb[0].mxu0
        %v465 = vadd.f32 0.0, %v464
        %v466 = vpop.f32.mrb[0].mxu0
        %v467 = vpop.f32.mrb[0].mxu0
        %v468 = vadd.f32 0.0, %v467
        %v469 = vpop.f32.mrb[0].mxu0
        %470 = vmatprep.mubr.bf16.mxu0 0
        %471 = vmatmul.mubr.bf16.gmra.mrb[0].mxu0 %v322
        %v472 = vpop.f32.mrb[0].mxu0
        %v473 = vadd.f32 0.0, %v472
        %v474 = vpop.f32.mrb[0].mxu0
        %v475 = vpop.f32.mrb[0].mxu0
        %v476 = vadd.f32 0.0, %v475
        %v477 = vpop.f32.mrb[0].mxu0
        %478 = vmatprep.mubr.bf16.mxu0 0
        %479 = vmatmul.mubr.bf16.gmra.mrb[0].mxu0 %v325
        %v480 = vpop.f32.mrb[0].mxu0
        %v481 = vadd.f32 0.0, %v480
        %v482 = vpop.f32.mrb[0].mxu0
        %v483 = vpop.f32.mrb[0].mxu0
        %v484 = vadd.f32 0.0, %v483
        %v485 = vpop.f32.mrb[0].mxu0
        %486 = vmatprep.mubr.bf16.mxu0 0
        %487 = vmatmul.mubr.bf16.gmra.mrb[0].mxu0 %v328
        %v488 = vpop.f32.mrb[0].mxu0
        %v489 = vadd.f32 0.0, %v488
        %v490 = vpop.f32.mrb[0].mxu0
        %v491 = vpop.f32.mrb[0].mxu0
        %v492 = vadd.f32 0.0, %v491
        %v493 = vpop.f32.mrb[0].mxu0
        %494 = vdwg.mxu0
        %495 = vst [vmem:[%s150] sm:$0xff] %v369
        %496 = vst [vmem:[%s150 + $0x8] sm:$0xff] %v372
        %497 = vst [vmem:[%s150 + $0x10] sm:$0xff] %v377
        %498 = vst [vmem:[%s150 + $0x18] sm:$0xff] %v380
        %499 = vst [vmem:[%s150 + $0x20] sm:$0xff] %v385
        %500 = vst [vmem:[%s150 + $0x28] sm:$0xff] %v388
        %501 = vst [vmem:[%s150 + $0x30] sm:$0xff] %v393
        %502 = vst [vmem:[%s150 + $0x38] sm:$0xff] %v396
        %503 = vst [vmem:[%s150 + $0x40] sm:$0xff] %v401
        %504 = vst [vmem:[%s150 + $0x48] sm:$0xff] %v404
        %505 = vst [vmem:[%s150 + $0x50] sm:$0xff] %v409
        %506 = vst [vmem:[%s150 + $0x58] sm:$0xff] %v412
        %507 = vst [vmem:[%s150 + $0x60] sm:$0xff] %v417
        %508 = vst [vmem:[%s150 + $0x68] sm:$0xff] %v420
        %509 = vst [vmem:[%s150 + $0x70] sm:$0xff] %v425
        %510 = vst [vmem:[%s150 + $0x78] sm:$0xff] %v428
        %511 = vst [vmem:[%s150 + $0x80] sm:$0xff] %v433
        %512 = vst [vmem:[%s150 + $0x88] sm:$0xff] %v436
        %513 = vst [vmem:[%s150 + $0x90] sm:$0xff] %v441
        %514 = vst [vmem:[%s150 + $0x98] sm:$0xff] %v444
        %515 = vst [vmem:[%s150 + $0xa0] sm:$0xff] %v449
        %516 = vst [vmem:[%s150 + $0xa8] sm:$0xff] %v452
        %517 = vst [vmem:[%s150 + $0xb0] sm:$0xff] %v457
        %518 = vst [vmem:[%s150 + $0xb8] sm:$0xff] %v460
        %519 = vst [vmem:[%s150 + $0xc0] sm:$0xff] %v465
        %520 = vst [vmem:[%s150 + $0xc8] sm:$0xff] %v468
        %521 = vst [vmem:[%s150 + $0xd0] sm:$0xff] %v473
        %522 = vst [vmem:[%s150 + $0xd8] sm:$0xff] %v476
        %523 = vst [vmem:[%s150 + $0xe0] sm:$0xff] %v481
        %524 = vst [vmem:[%s150 + $0xe8] sm:$0xff] %v484
        %525 = vst [vmem:[%s150 + $0xf0] sm:$0xff] %v489
        %526 = vst [vmem:[%s150 + $0xf8] sm:$0xff] %v492
        %v527 = vld [vmem:[%s150] sm:$0xff]
        %v528 = vld [vmem:[%s150 + $0x8] sm:$0xff]
        %v529 = vld [vmem:[%s150 + $0x10] sm:$0xff]
        %v530 = vld [vmem:[%s150 + $0x18] sm:$0xff]
        %v531 = vld [vmem:[%s150 + $0x20] sm:$0xff]
        %v532 = vld [vmem:[%s150 + $0x28] sm:$0xff]
        %v533 = vld [vmem:[%s150 + $0x30] sm:$0xff]
        %v534 = vld [vmem:[%s150 + $0x38] sm:$0xff]
        %v535 = vld [vmem:[%s150 + $0x40] sm:$0xff]
        %v536 = vld [vmem:[%s150 + $0x48] sm:$0xff]
        %v537 = vld [vmem:[%s150 + $0x50] sm:$0xff]
        %v538 = vld [vmem:[%s150 + $0x58] sm:$0xff]
        %v539 = vld [vmem:[%s150 + $0x60] sm:$0xff]
        %v540 = vld [vmem:[%s150 + $0x68] sm:$0xff]
        %v541 = vld [vmem:[%s150 + $0x70] sm:$0xff]
        %v542 = vld [vmem:[%s150 + $0x78] sm:$0xff]
        %v543 = vld [vmem:[%s150 + $0x80] sm:$0xff]
        %v544 = vld [vmem:[%s150 + $0x88] sm:$0xff]
        %v545 = vld [vmem:[%s150 + $0x90] sm:$0xff]
        %v546 = vld [vmem:[%s150 + $0x98] sm:$0xff]
        %v547 = vld [vmem:[%s150 + $0xa0] sm:$0xff]
        %v548 = vld [vmem:[%s150 + $0xa8] sm:$0xff]
        %v549 = vld [vmem:[%s150 + $0xb0] sm:$0xff]
        %v550 = vld [vmem:[%s150 + $0xb8] sm:$0xff]
        %v551 = vld [vmem:[%s150 + $0xc0] sm:$0xff]
        %v552 = vld [vmem:[%s150 + $0xc8] sm:$0xff]
        %v553 = vld [vmem:[%s150 + $0xd0] sm:$0xff]
        %v554 = vld [vmem:[%s150 + $0xd8] sm:$0xff]
        %v555 = vld [vmem:[%s150 + $0xe0] sm:$0xff]
        %v556 = vld [vmem:[%s150 + $0xe8] sm:$0xff]
        %v557 = vld [vmem:[%s150 + $0xf0] sm:$0xff]
        %v558 = vld [vmem:[%s150 + $0xf8] sm:$0xff]
        %s559 = sadd.s32 %s158, 1
        %s560 = smul.u32 %s559, 2
        %s561 = smul.addr %s560, 4
        %s562 = scalar_lea.vmem %s155, %s561
        %v563 = vld [vmem:[%s562] sm:$0xf]
        %v564 = vld [vmem:[%s562 + $0x4] sm:$0xf]
        %v565 = vld [vmem:[%s562 + $0x8] sm:$0xf]
        %v566 = vld [vmem:[%s562 + $0xc] sm:$0xf]
        %v567 = vld [vmem:[%s562 + $0x10] sm:$0xf]
        %v568 = vld [vmem:[%s562 + $0x14] sm:$0xf]
        %v569 = vld [vmem:[%s562 + $0x18] sm:$0xf]
        %v570 = vld [vmem:[%s562 + $0x1c] sm:$0xf]
        %v571 = vld [vmem:[%s562 + $0x20] sm:$0xf]
        %v572 = vld [vmem:[%s562 + $0x24] sm:$0xf]
        %v573 = vld [vmem:[%s562 + $0x28] sm:$0xf]
        %v574 = vld [vmem:[%s562 + $0x2c] sm:$0xf]
        %v575 = vld [vmem:[%s562 + $0x30] sm:$0xf]
        %v576 = vld [vmem:[%s562 + $0x34] sm:$0xf]
        %v577 = vld [vmem:[%s562 + $0x38] sm:$0xf]
        %v578 = vld [vmem:[%s562 + $0x3c] sm:$0xf]
        %v579 = vld [vmem:[%s562 + $0x40] sm:$0xf]
        %v580 = vld [vmem:[%s562 + $0x44] sm:$0xf]
        %v581 = vld [vmem:[%s562 + $0x48] sm:$0xf]
        %v582 = vld [vmem:[%s562 + $0x4c] sm:$0xf]
        %v583 = vld [vmem:[%s562 + $0x50] sm:$0xf]
        %v584 = vld [vmem:[%s562 + $0x54] sm:$0xf]
        %v585 = vld [vmem:[%s562 + $0x58] sm:$0xf]
        %v586 = vld [vmem:[%s562 + $0x5c] sm:$0xf]
        %v587 = vld [vmem:[%s562 + $0x60] sm:$0xf]
        %v588 = vld [vmem:[%s562 + $0x64] sm:$0xf]
        %v589 = vld [vmem:[%s562 + $0x68] sm:$0xf]
        %v590 = vld [vmem:[%s562 + $0x6c] sm:$0xf]
        %v591 = vld [vmem:[%s562 + $0x70] sm:$0xf]
        %v592 = vld [vmem:[%s562 + $0x74] sm:$0xf]
        %v593 = vld [vmem:[%s562 + $0x78] sm:$0xf]
        %v594 = vld [vmem:[%s562 + $0x7c] sm:$0xf]
        %s595 = scalar_lea.vmem %s1, 8
        %v596 = vld [vmem:[%s595] sm:$0xf]
        %v597 = vld [vmem:[%s595 + $0x4] sm:$0x3]
        %v630 = vunpack.c.l.b16 %v563
        %v631 = vunpack.c.l.b16 %v564
        %v632 = vunpack.c.l.b16 %v565
        %v633 = vunpack.c.l.b16 %v566
        %v634 = vunpack.c.l.b16 %v567
        %v635 = vunpack.c.l.b16 %v568
        %v636 = vunpack.c.l.b16 %v569
        %v637 = vunpack.c.l.b16 %v570
        %v638 = vunpack.c.l.b16 %v571
        %v639 = vunpack.c.l.b16 %v572
        %v640 = vunpack.c.l.b16 %v573
        %v641 = vunpack.c.l.b16 %v574
        %v642 = vunpack.c.l.b16 %v575
        %v643 = vunpack.c.l.b16 %v576
        %v644 = vunpack.c.l.b16 %v577
        %v645 = vunpack.c.l.b16 %v578
        %v646 = vunpack.c.l.b16 %v579
        %v647 = vunpack.c.l.b16 %v580
        %v648 = vunpack.c.l.b16 %v581
        %v649 = vunpack.c.l.b16 %v582
        %v650 = vunpack.c.l.b16 %v583
        %v651 = vunpack.c.l.b16 %v584
        %v652 = vunpack.c.l.b16 %v585
        %v653 = vunpack.c.l.b16 %v586
        %v654 = vunpack.c.l.b16 %v587
        %v655 = vunpack.c.l.b16 %v588
        %v656 = vunpack.c.l.b16 %v589
        %v657 = vunpack.c.l.b16 %v590
        %v658 = vunpack.c.l.b16 %v591
        %v659 = vunpack.c.l.b16 %v592
        %v660 = vunpack.c.l.b16 %v593
        %v661 = vunpack.c.l.b16 %v594
        %v662 = vpack.c.b16 %v631, %v630
        %v663 = vpack.c.b16 %v633, %v632
        %v664 = vpack.c.b16 %v635, %v634
        %v665 = vpack.c.b16 %v637, %v636
        %v666 = vpack.c.b16 %v639, %v638
        %v667 = vpack.c.b16 %v641, %v640
        %v668 = vpack.c.b16 %v643, %v642
        %v669 = vpack.c.b16 %v645, %v644
        %v670 = vpack.c.b16 %v647, %v646
        %v671 = vpack.c.b16 %v649, %v648
        %v672 = vpack.c.b16 %v651, %v650
        %v673 = vpack.c.b16 %v653, %v652
        %v674 = vpack.c.b16 %v655, %v654
        %v675 = vpack.c.b16 %v657, %v656
        %v676 = vpack.c.b16 %v659, %v658
        %v677 = vpack.c.b16 %v661, %v660
        %v680 = vunpack.c.l.b16 %v596
        %v681 = vunpack.c.l.b16 %v597
        %v682 = vpack.c.b16 %v681, %v680
        %v684 = vsel %vm281, %v662, 0
        %v687 = vsel %vm281, %v663, 0
        %v690 = vsel %vm281, %v664, 0
        %v693 = vsel %vm281, %v665, 0
        %v696 = vsel %vm281, %v666, 0
        %v699 = vsel %vm281, %v667, 0
        %v702 = vsel %vm281, %v668, 0
        %v705 = vsel %vm281, %v669, 0
        %v708 = vsel %vm281, %v670, 0
        %v711 = vsel %vm281, %v671, 0
        %v714 = vsel %vm281, %v672, 0
        %v717 = vsel %vm281, %v673, 0
        %v720 = vsel %vm281, %v674, 0
        %v723 = vsel %vm281, %v675, 0
        %v726 = vsel %vm281, %v676, 0
        %v729 = vsel %vm281, %v677, 0
        %v732 = vsel %vm330, %v682, 0
        %734 = vmatprep.subr.bf16.mxu0 0
        %735 = vmatpush1.bf16.msra.mxu0 %v732
        %736 = vmatprep.subr.bf16.mxu0 0
        %737 = vmatpush1.bf16.msra.mxu0 0
        %738 = vmatprep.subr.bf16.mxu0 0
        %739 = vmatpush1.bf16.msra.mxu0 0
        %740 = vmatprep.subr.bf16.mxu0 0
        %741 = vmatpush1.bf16.msra.mxu0 0
        %742 = vmatprep.subr.bf16.mxu0 0
        %743 = vmatpush1.bf16.msra.mxu0 0
        %744 = vmatprep.subr.bf16.mxu0 0
        %745 = vmatpush1.bf16.msra.mxu0 0
        %746 = vmatprep.subr.bf16.mxu0 0
        %747 = vmatpush1.bf16.msra.mxu0 0
        %748 = vmatprep.subr.bf16.mxu0 0
        %749 = vmatpush1.bf16.msra.mxu0 0
        %750 = vmatprep.subr.bf16.mxu0 0
        %751 = vmatpush1.bf16.msra.mxu0 0
        %752 = vmatprep.subr.bf16.mxu0 0
        %753 = vmatpush1.bf16.msra.mxu0 0
        %754 = vmatprep.subr.bf16.mxu0 0
        %755 = vmatpush1.bf16.msra.mxu0 0
        %756 = vmatprep.subr.bf16.mxu0 0
        %757 = vmatpush1.bf16.msra.mxu0 0
        %758 = vmatprep.subr.bf16.mxu0 0
        %759 = vmatpush1.bf16.msra.mxu0 0
        %760 = vmatprep.subr.bf16.mxu0 0
        %761 = vmatpush1.bf16.msra.mxu0 0
        %762 = vmatprep.subr.bf16.mxu0 0
        %763 = vmatpush1.bf16.msra.mxu0 0
        %764 = vmatprep.subr.bf16.mxu0 0
        %765 = vmatpush1.bf16.msra.mxu0 0
        %766 = vmatprep.mubr.bf16.mxu0 0
        %767 = vmatmul.mubr.bf16.gmra.mrb[0].mxu0 %v684
        %v768 = vpop.f32.mrb[0].mxu0
        %v769 = vadd.f32 0.0, %v768
        %v770 = vpop.f32.mrb[0].mxu0
        %v771 = vpop.f32.mrb[0].mxu0
        %v772 = vadd.f32 0.0, %v771
        %v773 = vpop.f32.mrb[0].mxu0
        %774 = vmatprep.mubr.bf16.mxu0 0
        %775 = vmatmul.mubr.bf16.gmra.mrb[0].mxu0 %v687
        %v776 = vpop.f32.mrb[0].mxu0
        %v777 = vadd.f32 0.0, %v776
        %v778 = vpop.f32.mrb[0].mxu0
        %v779 = vpop.f32.mrb[0].mxu0
        %v780 = vadd.f32 0.0, %v779
        %v781 = vpop.f32.mrb[0].mxu0
        %782 = vmatprep.mubr.bf16.mxu0 0
        %783 = vmatmul.mubr.bf16.gmra.mrb[0].mxu0 %v690
        %v784 = vpop.f32.mrb[0].mxu0
        %v785 = vadd.f32 0.0, %v784
        %v786 = vpop.f32.mrb[0].mxu0
        %v787 = vpop.f32.mrb[0].mxu0
        %v788 = vadd.f32 0.0, %v787
        %v789 = vpop.f32.mrb[0].mxu0
        %790 = vmatprep.mubr.bf16.mxu0 0
        %791 = vmatmul.mubr.bf16.gmra.mrb[0].mxu0 %v693
        %v792 = vpop.f32.mrb[0].mxu0
        %v793 = vadd.f32 0.0, %v792
        %v794 = vpop.f32.mrb[0].mxu0
        %v795 = vpop.f32.mrb[0].mxu0
        %v796 = vadd.f32 0.0, %v795
        %v797 = vpop.f32.mrb[0].mxu0
        %798 = vmatprep.mubr.bf16.mxu0 0
        %799 = vmatmul.mubr.bf16.gmra.mrb[0].mxu0 %v696
        %v800 = vpop.f32.mrb[0].mxu0
        %v801 = vadd.f32 0.0, %v800
        %v802 = vpop.f32.mrb[0].mxu0
        %v803 = vpop.f32.mrb[0].mxu0
        %v804 = vadd.f32 0.0, %v803
        %v805 = vpop.f32.mrb[0].mxu0
        %806 = vmatprep.mubr.bf16.mxu0 0
        %807 = vmatmul.mubr.bf16.gmra.mrb[0].mxu0 %v699
        %v808 = vpop.f32.mrb[0].mxu0
        %v809 = vadd.f32 0.0, %v808
        %v810 = vpop.f32.mrb[0].mxu0
        %v811 = vpop.f32.mrb[0].mxu0
        %v812 = vadd.f32 0.0, %v811
        %v813 = vpop.f32.mrb[0].mxu0
        %814 = vmatprep.mubr.bf16.mxu0 0
        %815 = vmatmul.mubr.bf16.gmra.mrb[0].mxu0 %v702
        %v816 = vpop.f32.mrb[0].mxu0
        %v817 = vadd.f32 0.0, %v816
        %v818 = vpop.f32.mrb[0].mxu0
        %v819 = vpop.f32.mrb[0].mxu0
        %v820 = vadd.f32 0.0, %v819
        %v821 = vpop.f32.mrb[0].mxu0
        %822 = vmatprep.mubr.bf16.mxu0 0
        %823 = vmatmul.mubr.bf16.gmra.mrb[0].mxu0 %v705
        %v824 = vpop.f32.mrb[0].mxu0
        %v825 = vadd.f32 0.0, %v824
        %v826 = vpop.f32.mrb[0].mxu0
        %v827 = vpop.f32.mrb[0].mxu0
        %v828 = vadd.f32 0.0, %v827
        %v829 = vpop.f32.mrb[0].mxu0
        %830 = vmatprep.mubr.bf16.mxu0 0
        %831 = vmatmul.mubr.bf16.gmra.mrb[0].mxu0 %v708
        %v832 = vpop.f32.mrb[0].mxu0
        %v833 = vadd.f32 0.0, %v832
        %v834 = vpop.f32.mrb[0].mxu0
        %v835 = vpop.f32.mrb[0].mxu0
        %v836 = vadd.f32 0.0, %v835
        %v837 = vpop.f32.mrb[0].mxu0
        %838 = vmatprep.mubr.bf16.mxu0 0
        %839 = vmatmul.mubr.bf16.gmra.mrb[0].mxu0 %v711
        %v840 = vpop.f32.mrb[0].mxu0
        %v841 = vadd.f32 0.0, %v840
        %v842 = vpop.f32.mrb[0].mxu0
        %v843 = vpop.f32.mrb[0].mxu0
        %v844 = vadd.f32 0.0, %v843
        %v845 = vpop.f32.mrb[0].mxu0
        %846 = vmatprep.mubr.bf16.mxu0 0
        %847 = vmatmul.mubr.bf16.gmra.mrb[0].mxu0 %v714
        %v848 = vpop.f32.mrb[0].mxu0
        %v849 = vadd.f32 0.0, %v848
        %v850 = vpop.f32.mrb[0].mxu0
        %v851 = vpop.f32.mrb[0].mxu0
        %v852 = vadd.f32 0.0, %v851
        %v853 = vpop.f32.mrb[0].mxu0
        %854 = vmatprep.mubr.bf16.mxu0 0
        %855 = vmatmul.mubr.bf16.gmra.mrb[0].mxu0 %v717
        %v856 = vpop.f32.mrb[0].mxu0
        %v857 = vadd.f32 0.0, %v856
        %v858 = vpop.f32.mrb[0].mxu0
        %v859 = vpop.f32.mrb[0].mxu0
        %v860 = vadd.f32 0.0, %v859
        %v861 = vpop.f32.mrb[0].mxu0
        %862 = vmatprep.mubr.bf16.mxu0 0
        %863 = vmatmul.mubr.bf16.gmra.mrb[0].mxu0 %v720
        %v864 = vpop.f32.mrb[0].mxu0
        %v865 = vadd.f32 0.0, %v864
        %v866 = vpop.f32.mrb[0].mxu0
        %v867 = vpop.f32.mrb[0].mxu0
        %v868 = vadd.f32 0.0, %v867
        %v869 = vpop.f32.mrb[0].mxu0
        %870 = vmatprep.mubr.bf16.mxu0 0
        %871 = vmatmul.mubr.bf16.gmra.mrb[0].mxu0 %v723
        %v872 = vpop.f32.mrb[0].mxu0
        %v873 = vadd.f32 0.0, %v872
        %v874 = vpop.f32.mrb[0].mxu0
        %v875 = vpop.f32.mrb[0].mxu0
        %v876 = vadd.f32 0.0, %v875
        %v877 = vpop.f32.mrb[0].mxu0
        %878 = vmatprep.mubr.bf16.mxu0 0
        %879 = vmatmul.mubr.bf16.gmra.mrb[0].mxu0 %v726
        %v880 = vpop.f32.mrb[0].mxu0
        %v881 = vadd.f32 0.0, %v880
        %v882 = vpop.f32.mrb[0].mxu0
        %v883 = vpop.f32.mrb[0].mxu0
        %v884 = vadd.f32 0.0, %v883
        %v885 = vpop.f32.mrb[0].mxu0
        %886 = vmatprep.mubr.bf16.mxu0 0
        %887 = vmatmul.mubr.bf16.gmra.mrb[0].mxu0 %v729
        %v888 = vpop.f32.mrb[0].mxu0
        %v889 = vadd.f32 0.0, %v888
        %v890 = vpop.f32.mrb[0].mxu0
        %v891 = vpop.f32.mrb[0].mxu0
        %v892 = vadd.f32 0.0, %v891
        %v893 = vpop.f32.mrb[0].mxu0
        %894 = vdwg.mxu0
        %v895 = vadd.f32 %v527, %v769
        %v896 = vadd.f32 %v528, %v772
        %v897 = vadd.f32 %v529, %v777
        %v898 = vadd.f32 %v530, %v780
        %v899 = vadd.f32 %v531, %v785
        %v900 = vadd.f32 %v532, %v788
        %v901 = vadd.f32 %v533, %v793
        %v902 = vadd.f32 %v534, %v796
        %v903 = vadd.f32 %v535, %v801
        %v904 = vadd.f32 %v536, %v804
        %v905 = vadd.f32 %v537, %v809
        %v906 = vadd.f32 %v538, %v812
        %v907 = vadd.f32 %v539, %v817
        %v908 = vadd.f32 %v540, %v820
        %v909 = vadd.f32 %v541, %v825
        %v910 = vadd.f32 %v542, %v828
        %v911 = vadd.f32 %v543, %v833
        %v912 = vadd.f32 %v544, %v836
        %v913 = vadd.f32 %v545, %v841
        %v914 = vadd.f32 %v546, %v844
        %v915 = vadd.f32 %v547, %v849
        %v916 = vadd.f32 %v548, %v852
        %v917 = vadd.f32 %v549, %v857
        %v918 = vadd.f32 %v550, %v860
        %v919 = vadd.f32 %v551, %v865
        %v920 = vadd.f32 %v552, %v868
        %v921 = vadd.f32 %v553, %v873
        %v922 = vadd.f32 %v554, %v876
        %v923 = vadd.f32 %v555, %v881
        %v924 = vadd.f32 %v556, %v884
        %v925 = vadd.f32 %v557, %v889
        %v926 = vadd.f32 %v558, %v892
        %927 = vst [vmem:[%s150] sm:$0xff] %v895
        %928 = vst [vmem:[%s150 + $0x8] sm:$0xff] %v896
        %929 = vst [vmem:[%s150 + $0x10] sm:$0xff] %v897
        %930 = vst [vmem:[%s150 + $0x18] sm:$0xff] %v898
        %931 = vst [vmem:[%s150 + $0x20] sm:$0xff] %v899
        %932 = vst [vmem:[%s150 + $0x28] sm:$0xff] %v900
        %933 = vst [vmem:[%s150 + $0x30] sm:$0xff] %v901
        %934 = vst [vmem:[%s150 + $0x38] sm:$0xff] %v902
        %935 = vst [vmem:[%s150 + $0x40] sm:$0xff] %v903
        %936 = vst [vmem:[%s150 + $0x48] sm:$0xff] %v904
        %937 = vst [vmem:[%s150 + $0x50] sm:$0xff] %v905
        %938 = vst [vmem:[%s150 + $0x58] sm:$0xff] %v906
        %939 = vst [vmem:[%s150 + $0x60] sm:$0xff] %v907
        %940 = vst [vmem:[%s150 + $0x68] sm:$0xff] %v908
        %941 = vst [vmem:[%s150 + $0x70] sm:$0xff] %v909
        %942 = vst [vmem:[%s150 + $0x78] sm:$0xff] %v910
        %943 = vst [vmem:[%s150 + $0x80] sm:$0xff] %v911
        %944 = vst [vmem:[%s150 + $0x88] sm:$0xff] %v912
        %945 = vst [vmem:[%s150 + $0x90] sm:$0xff] %v913
        %946 = vst [vmem:[%s150 + $0x98] sm:$0xff] %v914
        %947 = vst [vmem:[%s150 + $0xa0] sm:$0xff] %v915
        %948 = vst [vmem:[%s150 + $0xa8] sm:$0xff] %v916
        %949 = vst [vmem:[%s150 + $0xb0] sm:$0xff] %v917
        %950 = vst [vmem:[%s150 + $0xb8] sm:$0xff] %v918
        %951 = vst [vmem:[%s150 + $0xc0] sm:$0xff] %v919
        %952 = vst [vmem:[%s150 + $0xc8] sm:$0xff] %v920
        %953 = vst [vmem:[%s150 + $0xd0] sm:$0xff] %v921
        %954 = vst [vmem:[%s150 + $0xd8] sm:$0xff] %v922
        %955 = vst [vmem:[%s150 + $0xe0] sm:$0xff] %v923
        %956 = vst [vmem:[%s150 + $0xe8] sm:$0xff] %v924
        %957 = vst [vmem:[%s150 + $0xf0] sm:$0xff] %v925
        %958 = vst [vmem:[%s150 + $0xf8] sm:$0xff] %v926
        %v959 = vld [vmem:[%s150] sm:$0xff]
        %v960 = vld [vmem:[%s150 + $0x8] sm:$0xff]
        %v961 = vld [vmem:[%s150 + $0x10] sm:$0xff]
        %v962 = vld [vmem:[%s150 + $0x18] sm:$0xff]
        %v963 = vld [vmem:[%s150 + $0x20] sm:$0xff]
        %v964 = vld [vmem:[%s150 + $0x28] sm:$0xff]
        %v965 = vld [vmem:[%s150 + $0x30] sm:$0xff]
        %v966 = vld [vmem:[%s150 + $0x38] sm:$0xff]
        %v967 = vld [vmem:[%s150 + $0x40] sm:$0xff]
        %v968 = vld [vmem:[%s150 + $0x48] sm:$0xff]
        %v969 = vld [vmem:[%s150 + $0x50] sm:$0xff]
        %v970 = vld [vmem:[%s150 + $0x58] sm:$0xff]
        %v971 = vld [vmem:[%s150 + $0x60] sm:$0xff]
        %v972 = vld [vmem:[%s150 + $0x68] sm:$0xff]
        %v973 = vld [vmem:[%s150 + $0x70] sm:$0xff]
        %v974 = vld [vmem:[%s150 + $0x78] sm:$0xff]
        %v975 = vld [vmem:[%s150 + $0x80] sm:$0xff]
        %v976 = vld [vmem:[%s150 + $0x88] sm:$0xff]
        %v977 = vld [vmem:[%s150 + $0x90] sm:$0xff]
        %v978 = vld [vmem:[%s150 + $0x98] sm:$0xff]
        %v979 = vld [vmem:[%s150 + $0xa0] sm:$0xff]
        %v980 = vld [vmem:[%s150 + $0xa8] sm:$0xff]
        %v981 = vld [vmem:[%s150 + $0xb0] sm:$0xff]
        %v982 = vld [vmem:[%s150 + $0xb8] sm:$0xff]
        %v983 = vld [vmem:[%s150 + $0xc0] sm:$0xff]
        %v984 = vld [vmem:[%s150 + $0xc8] sm:$0xff]
        %v985 = vld [vmem:[%s150 + $0xd0] sm:$0xff]
        %v986 = vld [vmem:[%s150 + $0xd8] sm:$0xff]
        %v987 = vld [vmem:[%s150 + $0xe0] sm:$0xff]
        %v988 = vld [vmem:[%s150 + $0xe8] sm:$0xff]
        %v989 = vld [vmem:[%s150 + $0xf0] sm:$0xff]
        %v990 = vld [vmem:[%s150 + $0xf8] sm:$0xff]
        %s991 = sadd.s32 %s158, 2
        %s992 = smul.u32 %s991, 2
        %s993 = smul.addr %s992, 4
        %s994 = scalar_lea.vmem %s155, %s993
        %v995 = vld [vmem:[%s994] sm:$0xf]
        %v996 = vld [vmem:[%s994 + $0x4] sm:$0xf]
        %v997 = vld [vmem:[%s994 + $0x8] sm:$0xf]
        %v998 = vld [vmem:[%s994 + $0xc] sm:$0xf]
        %v999 = vld [vmem:[%s994 + $0x10] sm:$0xf]
        %v1000 = vld [vmem:[%s994 + $0x14] sm:$0xf]
        %v1001 = vld [vmem:[%s994 + $0x18] sm:$0xf]
        %v1002 = vld [vmem:[%s994 + $0x1c] sm:$0xf]
        %v1003 = vld [vmem:[%s994 + $0x20] sm:$0xf]
        %v1004 = vld [vmem:[%s994 + $0x24] sm:$0xf]
        %v1005 = vld [vmem:[%s994 + $0x28] sm:$0xf]
        %v1006 = vld [vmem:[%s994 + $0x2c] sm:$0xf]
        %v1007 = vld [vmem:[%s994 + $0x30] sm:$0xf]
        %v1008 = vld [vmem:[%s994 + $0x34] sm:$0xf]
        %v1009 = vld [vmem:[%s994 + $0x38] sm:$0xf]
        %v1010 = vld [vmem:[%s994 + $0x3c] sm:$0xf]
        %v1011 = vld [vmem:[%s994 + $0x40] sm:$0xf]
        %v1012 = vld [vmem:[%s994 + $0x44] sm:$0xf]
        %v1013 = vld [vmem:[%s994 + $0x48] sm:$0xf]
        %v1014 = vld [vmem:[%s994 + $0x4c] sm:$0xf]
        %v1015 = vld [vmem:[%s994 + $0x50] sm:$0xf]
        %v1016 = vld [vmem:[%s994 + $0x54] sm:$0xf]
        %v1017 = vld [vmem:[%s994 + $0x58] sm:$0xf]
        %v1018 = vld [vmem:[%s994 + $0x5c] sm:$0xf]
        %v1019 = vld [vmem:[%s994 + $0x60] sm:$0xf]
        %v1020 = vld [vmem:[%s994 + $0x64] sm:$0xf]
        %v1021 = vld [vmem:[%s994 + $0x68] sm:$0xf]
        %v1022 = vld [vmem:[%s994 + $0x6c] sm:$0xf]
        %v1023 = vld [vmem:[%s994 + $0x70] sm:$0xf]
        %v1024 = vld [vmem:[%s994 + $0x74] sm:$0xf]
        %v1025 = vld [vmem:[%s994 + $0x78] sm:$0xf]
        %v1026 = vld [vmem:[%s994 + $0x7c] sm:$0xf]
        %s1027 = scalar_lea.vmem %s1, 16
        %v1028 = vld [vmem:[%s1027] sm:$0xf]
        %v1029 = vld [vmem:[%s1027 + $0x4] sm:$0x3]
        %v1062 = vunpack.c.l.b16 %v995
        %v1063 = vunpack.c.l.b16 %v996
        %v1064 = vunpack.c.l.b16 %v997
        %v1065 = vunpack.c.l.b16 %v998
        %v1066 = vunpack.c.l.b16 %v999
        %v1067 = vunpack.c.l.b16 %v1000
        %v1068 = vunpack.c.l.b16 %v1001
        %v1069 = vunpack.c.l.b16 %v1002
        %v1070 = vunpack.c.l.b16 %v1003
        %v1071 = vunpack.c.l.b16 %v1004
        %v1072 = vunpack.c.l.b16 %v1005
        %v1073 = vunpack.c.l.b16 %v1006
        %v1074 = vunpack.c.l.b16 %v1007
        %v1075 = vunpack.c.l.b16 %v1008
        %v1076 = vunpack.c.l.b16 %v1009
        %v1077 = vunpack.c.l.b16 %v1010
        %v1078 = vunpack.c.l.b16 %v1011
        %v1079 = vunpack.c.l.b16 %v1012
        %v1080 = vunpack.c.l.b16 %v1013
        %v1081 = vunpack.c.l.b16 %v1014
        %v1082 = vunpack.c.l.b16 %v1015
        %v1083 = vunpack.c.l.b16 %v1016
        %v1084 = vunpack.c.l.b16 %v1017
        %v1085 = vunpack.c.l.b16 %v1018
        %v1086 = vunpack.c.l.b16 %v1019
        %v1087 = vunpack.c.l.b16 %v1020
        %v1088 = vunpack.c.l.b16 %v1021
        %v1089 = vunpack.c.l.b16 %v1022
        %v1090 = vunpack.c.l.b16 %v1023
        %v1091 = vunpack.c.l.b16 %v1024
        %v1092 = vunpack.c.l.b16 %v1025
        %v1093 = vunpack.c.l.b16 %v1026
        %v1094 = vpack.c.b16 %v1063, %v1062
        %v1095 = vpack.c.b16 %v1065, %v1064
        %v1096 = vpack.c.b16 %v1067, %v1066
        %v1097 = vpack.c.b16 %v1069, %v1068
        %v1098 = vpack.c.b16 %v1071, %v1070
        %v1099 = vpack.c.b16 %v1073, %v1072
        %v1100 = vpack.c.b16 %v1075, %v1074
        %v1101 = vpack.c.b16 %v1077, %v1076
        %v1102 = vpack.c.b16 %v1079, %v1078
        %v1103 = vpack.c.b16 %v1081, %v1080
        %v1104 = vpack.c.b16 %v1083, %v1082
        %v1105 = vpack.c.b16 %v1085, %v1084
        %v1106 = vpack.c.b16 %v1087, %v1086
        %v1107 = vpack.c.b16 %v1089, %v1088
        %v1108 = vpack.c.b16 %v1091, %v1090
        %v1109 = vpack.c.b16 %v1093, %v1092
        %v1112 = vunpack.c.l.b16 %v1028
        %v1113 = vunpack.c.l.b16 %v1029
        %v1114 = vpack.c.b16 %v1113, %v1112
        %v1116 = vsel %vm281, %v1094, 0
        %v1119 = vsel %vm281, %v1095, 0
        %v1122 = vsel %vm281, %v1096, 0
        %v1125 = vsel %vm281, %v1097, 0
        %v1128 = vsel %vm281, %v1098, 0
        %v1131 = vsel %vm281, %v1099, 0
        %v1134 = vsel %vm281, %v1100, 0
        %v1137 = vsel %vm281, %v1101, 0
        %v1140 = vsel %vm281, %v1102, 0
        %v1143 = vsel %vm281, %v1103, 0
        %v1146 = vsel %vm281, %v1104, 0
        %v1149 = vsel %vm281, %v1105, 0
        %v1152 = vsel %vm281, %v1106, 0
        %v1155 = vsel %vm281, %v1107, 0
        %v1158 = vsel %vm281, %v1108, 0
        %v1161 = vsel %vm281, %v1109, 0
        %v1164 = vsel %vm330, %v1114, 0
        %1166 = vmatprep.subr.bf16.mxu0 0
        %1167 = vmatpush1.bf16.msra.mxu0 %v1164
        %1168 = vmatprep.subr.bf16.mxu0 0
        %1169 = vmatpush1.bf16.msra.mxu0 0
        %1170 = vmatprep.subr.bf16.mxu0 0
        %1171 = vmatpush1.bf16.msra.mxu0 0
        %1172 = vmatprep.subr.bf16.mxu0 0
        %1173 = vmatpush1.bf16.msra.mxu0 0
        %1174 = vmatprep.subr.bf16.mxu0 0
        %1175 = vmatpush1.bf16.msra.mxu0 0
        %1176 = vmatprep.subr.bf16.mxu0 0
        %1177 = vmatpush1.bf16.msra.mxu0 0
        %1178 = vmatprep.subr.bf16.mxu0 0
        %1179 = vmatpush1.bf16.msra.mxu0 0
        %1180 = vmatprep.subr.bf16.mxu0 0
        %1181 = vmatpush1.bf16.msra.mxu0 0
        %1182 = vmatprep.subr.bf16.mxu0 0
        %1183 = vmatpush1.bf16.msra.mxu0 0
        %1184 = vmatprep.subr.bf16.mxu0 0
        %1185 = vmatpush1.bf16.msra.mxu0 0
        %1186 = vmatprep.subr.bf16.mxu0 0
        %1187 = vmatpush1.bf16.msra.mxu0 0
        %1188 = vmatprep.subr.bf16.mxu0 0
        %1189 = vmatpush1.bf16.msra.mxu0 0
        %1190 = vmatprep.subr.bf16.mxu0 0
        %1191 = vmatpush1.bf16.msra.mxu0 0
        %1192 = vmatprep.subr.bf16.mxu0 0
        %1193 = vmatpush1.bf16.msra.mxu0 0
        %1194 = vmatprep.subr.bf16.mxu0 0
        %1195 = vmatpush1.bf16.msra.mxu0 0
        %1196 = vmatprep.subr.bf16.mxu0 0
        %1197 = vmatpush1.bf16.msra.mxu0 0
        %1198 = vmatprep.mubr.bf16.mxu0 0
        %1199 = vmatmul.mubr.bf16.gmra.mrb[0].mxu0 %v1116
        %v1200 = vpop.f32.mrb[0].mxu0
        %v1201 = vadd.f32 0.0, %v1200
        %v1202 = vpop.f32.mrb[0].mxu0
        %v1203 = vpop.f32.mrb[0].mxu0
        %v1204 = vadd.f32 0.0, %v1203
        %v1205 = vpop.f32.mrb[0].mxu0
        %1206 = vmatprep.mubr.bf16.mxu0 0
        %1207 = vmatmul.mubr.bf16.gmra.mrb[0].mxu0 %v1119
        %v1208 = vpop.f32.mrb[0].mxu0
        %v1209 = vadd.f32 0.0, %v1208
        %v1210 = vpop.f32.mrb[0].mxu0
        %v1211 = vpop.f32.mrb[0].mxu0
        %v1212 = vadd.f32 0.0, %v1211
        %v1213 = vpop.f32.mrb[0].mxu0
        %1214 = vmatprep.mubr.bf16.mxu0 0
        %1215 = vmatmul.mubr.bf16.gmra.mrb[0].mxu0 %v1122
        %v1216 = vpop.f32.mrb[0].mxu0
        %v1217 = vadd.f32 0.0, %v1216
        %v1218 = vpop.f32.mrb[0].mxu0
        %v1219 = vpop.f32.mrb[0].mxu0
        %v1220 = vadd.f32 0.0, %v1219
        %v1221 = vpop.f32.mrb[0].mxu0
        %1222 = vmatprep.mubr.bf16.mxu0 0
        %1223 = vmatmul.mubr.bf16.gmra.mrb[0].mxu0 %v1125
        %v1224 = vpop.f32.mrb[0].mxu0
        %v1225 = vadd.f32 0.0, %v1224
        %v1226 = vpop.f32.mrb[0].mxu0
        %v1227 = vpop.f32.mrb[0].mxu0
        %v1228 = vadd.f32 0.0, %v1227
        %v1229 = vpop.f32.mrb[0].mxu0
        %1230 = vmatprep.mubr.bf16.mxu0 0
        %1231 = vmatmul.mubr.bf16.gmra.mrb[0].mxu0 %v1128
        %v1232 = vpop.f32.mrb[0].mxu0
        %v1233 = vadd.f32 0.0, %v1232
        %v1234 = vpop.f32.mrb[0].mxu0
        %v1235 = vpop.f32.mrb[0].mxu0
        %v1236 = vadd.f32 0.0, %v1235
        %v1237 = vpop.f32.mrb[0].mxu0
        %1238 = vmatprep.mubr.bf16.mxu0 0
        %1239 = vmatmul.mubr.bf16.gmra.mrb[0].mxu0 %v1131
        %v1240 = vpop.f32.mrb[0].mxu0
        %v1241 = vadd.f32 0.0, %v1240
        %v1242 = vpop.f32.mrb[0].mxu0
        %v1243 = vpop.f32.mrb[0].mxu0
        %v1244 = vadd.f32 0.0, %v1243
        %v1245 = vpop.f32.mrb[0].mxu0
        %1246 = vmatprep.mubr.bf16.mxu0 0
        %1247 = vmatmul.mubr.bf16.gmra.mrb[0].mxu0 %v1134
        %v1248 = vpop.f32.mrb[0].mxu0
        %v1249 = vadd.f32 0.0, %v1248
        %v1250 = vpop.f32.mrb[0].mxu0
        %v1251 = vpop.f32.mrb[0].mxu0
        %v1252 = vadd.f32 0.0, %v1251
        %v1253 = vpop.f32.mrb[0].mxu0
        %1254 = vmatprep.mubr.bf16.mxu0 0
        %1255 = vmatmul.mubr.bf16.gmra.mrb[0].mxu0 %v1137
        %v1256 = vpop.f32.mrb[0].mxu0
        %v1257 = vadd.f32 0.0, %v1256
        %v1258 = vpop.f32.mrb[0].mxu0
        %v1259 = vpop.f32.mrb[0].mxu0
        %v1260 = vadd.f32 0.0, %v1259
        %v1261 = vpop.f32.mrb[0].mxu0
        %1262 = vmatprep.mubr.bf16.mxu0 0
        %1263 = vmatmul.mubr.bf16.gmra.mrb[0].mxu0 %v1140
        %v1264 = vpop.f32.mrb[0].mxu0
        %v1265 = vadd.f32 0.0, %v1264
        %v1266 = vpop.f32.mrb[0].mxu0
        %v1267 = vpop.f32.mrb[0].mxu0
        %v1268 = vadd.f32 0.0, %v1267
        %v1269 = vpop.f32.mrb[0].mxu0
        %1270 = vmatprep.mubr.bf16.mxu0 0
        %1271 = vmatmul.mubr.bf16.gmra.mrb[0].mxu0 %v1143
        %v1272 = vpop.f32.mrb[0].mxu0
        %v1273 = vadd.f32 0.0, %v1272
        %v1274 = vpop.f32.mrb[0].mxu0
        %v1275 = vpop.f32.mrb[0].mxu0
        %v1276 = vadd.f32 0.0, %v1275
        %v1277 = vpop.f32.mrb[0].mxu0
        %1278 = vmatprep.mubr.bf16.mxu0 0
        %1279 = vmatmul.mubr.bf16.gmra.mrb[0].mxu0 %v1146
        %v1280 = vpop.f32.mrb[0].mxu0
        %v1281 = vadd.f32 0.0, %v1280
        %v1282 = vpop.f32.mrb[0].mxu0
        %v1283 = vpop.f32.mrb[0].mxu0
        %v1284 = vadd.f32 0.0, %v1283
        %v1285 = vpop.f32.mrb[0].mxu0
        %1286 = vmatprep.mubr.bf16.mxu0 0
        %1287 = vmatmul.mubr.bf16.gmra.mrb[0].mxu0 %v1149
        %v1288 = vpop.f32.mrb[0].mxu0
        %v1289 = vadd.f32 0.0, %v1288
        %v1290 = vpop.f32.mrb[0].mxu0
        %v1291 = vpop.f32.mrb[0].mxu0
        %v1292 = vadd.f32 0.0, %v1291
        %v1293 = vpop.f32.mrb[0].mxu0
        %1294 = vmatprep.mubr.bf16.mxu0 0
        %1295 = vmatmul.mubr.bf16.gmra.mrb[0].mxu0 %v1152
        %v1296 = vpop.f32.mrb[0].mxu0
        %v1297 = vadd.f32 0.0, %v1296
        %v1298 = vpop.f32.mrb[0].mxu0
        %v1299 = vpop.f32.mrb[0].mxu0
        %v1300 = vadd.f32 0.0, %v1299
        %v1301 = vpop.f32.mrb[0].mxu0
        %1302 = vmatprep.mubr.bf16.mxu0 0
        %1303 = vmatmul.mubr.bf16.gmra.mrb[0].mxu0 %v1155
        %v1304 = vpop.f32.mrb[0].mxu0
        %v1305 = vadd.f32 0.0, %v1304
        %v1306 = vpop.f32.mrb[0].mxu0
        %v1307 = vpop.f32.mrb[0].mxu0
        %v1308 = vadd.f32 0.0, %v1307
        %v1309 = vpop.f32.mrb[0].mxu0
        %1310 = vmatprep.mubr.bf16.mxu0 0
        %1311 = vmatmul.mubr.bf16.gmra.mrb[0].mxu0 %v1158
        %v1312 = vpop.f32.mrb[0].mxu0
        %v1313 = vadd.f32 0.0, %v1312
        %v1314 = vpop.f32.mrb[0].mxu0
        %v1315 = vpop.f32.mrb[0].mxu0
        %v1316 = vadd.f32 0.0, %v1315
        %v1317 = vpop.f32.mrb[0].mxu0
        %1318 = vmatprep.mubr.bf16.mxu0 0
        %1319 = vmatmul.mubr.bf16.gmra.mrb[0].mxu0 %v1161
        %v1320 = vpop.f32.mrb[0].mxu0
        %v1321 = vadd.f32 0.0, %v1320
        %v1322 = vpop.f32.mrb[0].mxu0
        %v1323 = vpop.f32.mrb[0].mxu0
        %v1324 = vadd.f32 0.0, %v1323
        %v1325 = vpop.f32.mrb[0].mxu0
        %1326 = vdwg.mxu0
        %v1327 = vadd.f32 %v959, %v1201
        %v1328 = vadd.f32 %v960, %v1204
        %v1329 = vadd.f32 %v961, %v1209
        %v1330 = vadd.f32 %v962, %v1212
        %v1331 = vadd.f32 %v963, %v1217
        %v1332 = vadd.f32 %v964, %v1220
        %v1333 = vadd.f32 %v965, %v1225
        %v1334 = vadd.f32 %v966, %v1228
        %v1335 = vadd.f32 %v967, %v1233
        %v1336 = vadd.f32 %v968, %v1236
        %v1337 = vadd.f32 %v969, %v1241
        %v1338 = vadd.f32 %v970, %v1244
        %v1339 = vadd.f32 %v971, %v1249
        %v1340 = vadd.f32 %v972, %v1252
        %v1341 = vadd.f32 %v973, %v1257
        %v1342 = vadd.f32 %v974, %v1260
        %v1343 = vadd.f32 %v975, %v1265
        %v1344 = vadd.f32 %v976, %v1268
        %v1345 = vadd.f32 %v977, %v1273
        %v1346 = vadd.f32 %v978, %v1276
        %v1347 = vadd.f32 %v979, %v1281
        %v1348 = vadd.f32 %v980, %v1284
        %v1349 = vadd.f32 %v981, %v1289
        %v1350 = vadd.f32 %v982, %v1292
        %v1351 = vadd.f32 %v983, %v1297
        %v1352 = vadd.f32 %v984, %v1300
        %v1353 = vadd.f32 %v985, %v1305
        %v1354 = vadd.f32 %v986, %v1308
        %v1355 = vadd.f32 %v987, %v1313
        %v1356 = vadd.f32 %v988, %v1316
        %v1357 = vadd.f32 %v989, %v1321
        %v1358 = vadd.f32 %v990, %v1324
        %1359 = vst [vmem:[%s150] sm:$0xff] %v1327
        %1360 = vst [vmem:[%s150 + $0x8] sm:$0xff] %v1328
        %1361 = vst [vmem:[%s150 + $0x10] sm:$0xff] %v1329
        %1362 = vst [vmem:[%s150 + $0x18] sm:$0xff] %v1330
        %1363 = vst [vmem:[%s150 + $0x20] sm:$0xff] %v1331
        %1364 = vst [vmem:[%s150 + $0x28] sm:$0xff] %v1332
        %1365 = vst [vmem:[%s150 + $0x30] sm:$0xff] %v1333
        %1366 = vst [vmem:[%s150 + $0x38] sm:$0xff] %v1334
        %1367 = vst [vmem:[%s150 + $0x40] sm:$0xff] %v1335
        %1368 = vst [vmem:[%s150 + $0x48] sm:$0xff] %v1336
        %1369 = vst [vmem:[%s150 + $0x50] sm:$0xff] %v1337
        %1370 = vst [vmem:[%s150 + $0x58] sm:$0xff] %v1338
        %1371 = vst [vmem:[%s150 + $0x60] sm:$0xff] %v1339
        %1372 = vst [vmem:[%s150 + $0x68] sm:$0xff] %v1340
        %1373 = vst [vmem:[%s150 + $0x70] sm:$0xff] %v1341
        %1374 = vst [vmem:[%s150 + $0x78] sm:$0xff] %v1342
        %1375 = vst [vmem:[%s150 + $0x80] sm:$0xff] %v1343
        %1376 = vst [vmem:[%s150 + $0x88] sm:$0xff] %v1344
        %1377 = vst [vmem:[%s150 + $0x90] sm:$0xff] %v1345
        %1378 = vst [vmem:[%s150 + $0x98] sm:$0xff] %v1346
        %1379 = vst [vmem:[%s150 + $0xa0] sm:$0xff] %v1347
        %1380 = vst [vmem:[%s150 + $0xa8] sm:$0xff] %v1348
        %1381 = vst [vmem:[%s150 + $0xb0] sm:$0xff] %v1349
        %1382 = vst [vmem:[%s150 + $0xb8] sm:$0xff] %v1350
        %1383 = vst [vmem:[%s150 + $0xc0] sm:$0xff] %v1351
        %1384 = vst [vmem:[%s150 + $0xc8] sm:$0xff] %v1352
        %1385 = vst [vmem:[%s150 + $0xd0] sm:$0xff] %v1353
        %1386 = vst [vmem:[%s150 + $0xd8] sm:$0xff] %v1354
        %1387 = vst [vmem:[%s150 + $0xe0] sm:$0xff] %v1355
        %1388 = vst [vmem:[%s150 + $0xe8] sm:$0xff] %v1356
        %1389 = vst [vmem:[%s150 + $0xf0] sm:$0xff] %v1357
        %1390 = vst [vmem:[%s150 + $0xf8] sm:$0xff] %v1358
        %s1391 = sand.u32 %s85, 1
        %s1392 = scalar_lea.sflag [#allocation3], %s1391
        %s1393 = sand.u32 %s85, 1
        %s1394 = smul.addr %s1393, 256
        %s1395 = scalar_lea.vmem [#allocation2], %s1394
        // Predicated region
        $region29: #{tpu_custom_call.1} parent=27 // pred_check
          %p1396 = pneg %p95
        $region30: #{tpu_custom_call.1} parent=27 // pred_check_branch
          %1398 = sbr.rel (%p1396) target = $region32
        $region31: #{tpu_custom_call.1} parent=27 // pred_region
          %s1399 = smul.u32 32, %s21
          %s1401 = ssub.s32 4096, 4096
          %1402 = vsyncadd %s1392, %s1401
          %s1403 = smul.addr %s20, 32
          %s1404 = sadd.s32 %s1399, %s1403
          %s1405 = smul.addr %s1404, 128
          %s1406 = scalar_lea.hbm %s2, %s1405
          %s1407 = sshll.u32 %s1395, 4
          %s1408 = int_to_ptr.vmem [resolvable:$true] %s1407
          %1413 = dma.vmem_to_hbm [thread:$0]  %s1408, 4096, %s1406, %s1392, 128, 128, 8
        $region32: #{tpu_custom_call.1} parent=27 // pred_fallthru
          _
      $region28: #{tpu_custom_call.1} parent=5 // pred_fallthru
        _
      %p1414 = scmp.le.s32.totalorder 2, %s11
      // Predicated region
      $region33: #{tpu_custom_call.1} parent=5 // pred_check
        %p1415 = pneg %p1414
      $region34: #{tpu_custom_call.1} parent=5 // pred_check_branch
        %1417 = sbr.rel (%p1415) target = $region36
      $region35: #{tpu_custom_call.1} parent=5 // pred_region
        %s1418 = ssub.s32 %s11, 2
        // Predicated region
        $region37: #{tpu_custom_call.1} parent=35 // pred_check
          %p1419 = pneg %p101
        $region38: #{tpu_custom_call.1} parent=35 // pred_check_branch
          %1421 = sbr.rel (%p1419) target = $region40
        $region39: #{tpu_custom_call.1} parent=35 // pred_region
          %s1422 = sand.u32 %s86, 1
          %s1423 = scalar_lea.sflag [#allocation3], %s1422
          %s1424 = sand.u32 %s86, 1
          %s1425 = smul.addr %s1424, 256
          %s1426 = scalar_lea.vmem [#allocation2], %s1425
          %1427 = dma.done %s1423, 4096
        $region40: #{tpu_custom_call.1} parent=35 // pred_fallthru
          _
      $region36: #{tpu_custom_call.1} parent=5 // pred_fallthru
        _
    $region6: #{tpu_custom_call.1} parent=1 // loop_footer
      %s15 = sadd.s32 1, %s11
    $region7: #{tpu_custom_call.1} parent=1 // loop_footer_branch
      %10 = sbr.rel target = $region3
    $region8: #{tpu_custom_call.1} parent=1 // loop_exit
      _
    %1428 = vsyncpa [#allocation3], 1
    %s1429 = scalar_lea.sflag [#allocation3], 1
    %1430 = vsyncpa %s1429, 1

</llo_original>
